<compile_context>
chip_gen: v5e
topology: v5e:2x2
jax: 0.10.0
libtpu: 0.0.40
codegen_flags: <defaults>
</compile_context>

<pallas_src>
import math
import functools

import jax
import jax.numpy as jnp
from jax.experimental import pallas as pl
from jax.experimental.pallas import tpu as pltpu

LRELU_SLOPE = 0.2
SQRT2 = math.sqrt(2.0)


# ---------------------------------------------------------------------------
# Dependent helper (ported verbatim from the PyTorch source)
# ---------------------------------------------------------------------------
def get_stylegan_conv_dimensions(size, channel_multiplier=2):
    channels = {4: 512, 8: 512, 16: 512, 32: 512, 64: 256 * channel_multiplier,
                128: 128 * channel_multiplier, 256: 64 * channel_multiplier,
                512: 32 * channel_multiplier, 1024: 16 * channel_multiplier}
    log_size = int(math.log(size, 2))
    conv_dimensions = [(channels[4], channels[4])]
    in_channel = channels[4]
    for i in range(3, log_size + 1):
        out_channel = channels[2 ** i]
        conv_dimensions.append((in_channel, out_channel))
        conv_dimensions.append((out_channel, out_channel))
        in_channel = out_channel
    return conv_dimensions


# ---------------------------------------------------------------------------
# Pallas kernels
# ---------------------------------------------------------------------------
def _mapping_kernel(z_ref, w_ref, b_ref, o_ref, *, n_layers):
    """Fused mapping network: PixelNorm + n_layers x (EqualLinear + fused lrelu).

    z_ref: (B, D) f32, w_ref: (n_layers, D, D) bf16 (scale pre-applied, transposed),
    b_ref: (n_layers, 1, D) f32 (lr_mul pre-applied).  Activation stays in VMEM.
    """
    x = z_ref[...]
    # PixelNorm on z
    x = x * jax.lax.rsqrt(jnp.mean(x * x, axis=-1, keepdims=True) + 1e-8)

    def body(i, x):
        y = jnp.dot(x.astype(jnp.bfloat16), w_ref[i],
                    preferred_element_type=jnp.float32) + b_ref[i]
        # fused_leaky_relu
        return jnp.where(y >= 0.0, y, LRELU_SLOPE * y) * SQRT2

    x = jax.lax.fori_loop(0, n_layers, body, x, unroll=True)
    o_ref[...] = x.astype(o_ref.dtype)


def mapping_network(prep, z):
    """source_generator.style: one pallas_call for the whole 8-layer MLP."""
    B, D = z.shape
    n_layers = prep['map_w'].shape[0]
    kernel = functools.partial(_mapping_kernel, n_layers=n_layers)
    return pl.pallas_call(
        kernel,
        out_shape=jax.ShapeDtypeStruct((B, D), jnp.float32),
        grid=(1,),
        in_specs=[pl.BlockSpec((B, D), lambda i: (0, 0)),
                  pl.BlockSpec((n_layers, D, D), lambda i: (0, 0, 0)),
                  pl.BlockSpec((n_layers, 1, D), lambda i: (0, 0, 0))],
        out_specs=pl.BlockSpec((B, D), lambda i: (0, 0)),
    )(z, prep['map_w'], prep['map_b'])


def _modconv_kernel(lat_ref, mw_ref, mb_ref, x_ref, w_ref, b_ref, o_ref, *,
                    demodulate, act):
    """Fused {style projection + modulated/demodulated 1x1 conv + bias + lrelu}.

    Activation-side modulation: W_mod @ x == W @ (s * x), so the (Cin, Cout)
    weight matmul is shared across the batch; per-sample demod applied after.
    Layout: x (tile, Cin) channels-last -> output (tile, Cout) is lane-dense.
    """
    lat = lat_ref[0]                                          # (1, D) f32
    # style -> per-input-channel modulation (EqualLinear, bias init 1)
    s = jnp.dot(lat.astype(jnp.bfloat16), mw_ref[...],
                preferred_element_type=jnp.float32) + mb_ref[...]      # (1, Cin)

    x = x_ref[0]                                              # (tile, Cin) f32
    xm = (x * s).astype(jnp.bfloat16)                         # modulation on VPU (f32)
    w = w_ref[...]                                            # (Cin, Cout) bf16
    y = jnp.dot(xm, w, preferred_element_type=jnp.float32)    # (tile, Cout)

    if demodulate:
        wf = w.astype(jnp.float32)
        # d[b, co] = rsqrt(sum_ci (w[ci,co] * s[b,ci])^2 + eps) == rsqrt((s^2)@(w^2))
        d = jax.lax.rsqrt(jnp.dot(s * s, wf * wf,
                                  preferred_element_type=jnp.float32) + 1e-8)
        y = y * d

    y = y + b_ref[...]
    if act:
        y = jnp.where(y >= 0.0, y, LRELU_SLOPE * y) * SQRT2
    o_ref[0] = y.astype(o_ref.dtype)


def modulated_conv(x, lat, w, mod_w, mod_b, bias, *, demodulate, act, hw_tile=512):
    """x: (B, HW, Cin) channels-last; lat: (B, D); w: (Cin, Cout) bf16 (prepped)."""
    B, HW, Cin = x.shape
    Cout = w.shape[1]
    D = lat.shape[-1]
    tile = min(HW, hw_tile)
    if HW % tile != 0:
        tile = HW
    T = HW // tile
    lat3 = lat.reshape(B, 1, D)
    kernel = functools.partial(_modconv_kernel, demodulate=demodulate, act=act)
    return pl.pallas_call(
        kernel,
        out_shape=jax.ShapeDtypeStruct((B, HW, Cout), jnp.float32),
        grid=(B, T),
        in_specs=[
            pl.BlockSpec((1, 1, D), lambda b, t: (b, 0, 0)),        # latent row
            pl.BlockSpec((D, Cin), lambda b, t: (0, 0)),            # mod_w (bf16)
            pl.BlockSpec((1, Cin), lambda b, t: (0, 0)),            # mod_b
            pl.BlockSpec((1, tile, Cin), lambda b, t: (b, t, 0)),   # activations
            pl.BlockSpec((Cin, Cout), lambda b, t: (0, 0)),         # conv weight (bf16)
            pl.BlockSpec((1, Cout), lambda b, t: (0, 0)),           # bias
        ],
        out_specs=pl.BlockSpec((1, tile, Cout), lambda b, t: (b, t, 0)),
        compiler_params=pltpu.CompilerParams(
            dimension_semantics=("parallel", "parallel"),
            vmem_limit_bytes=32 * 1024 * 1024),
    )(lat3, mod_w, mod_b, x, w, bias)


# ---------------------------------------------------------------------------
# Plain-jnp glue (too small to deserve a kernel launch)
# ---------------------------------------------------------------------------
def style_mix(w_broad, style_latents, alpha):
    """latents[:, 7:] = (1-alpha)*latents[:, 7:] + alpha*style_latents[7:]."""
    sty = style_latents[None, 7:, :]
    mixed = (1.0 - alpha) * w_broad[:, 7:, :] + alpha * sty
    return jnp.concatenate([w_broad[:, :7, :], mixed], axis=1)


def upsample2x_nn(x, H, W):
    """Nearest-neighbor 2x upsample of (B, H*W, C) channels-last feature map."""
    # TODO(synk): StyleGAN2 uses blur + upfirdn2d transposed conv; NN upsample used here.
    B, HW, C = x.shape
    x = x.reshape(B, H, W, C)
    x = jnp.repeat(jnp.repeat(x, 2, axis=1), 2, axis=2)
    return x.reshape(B, 4 * HW, C)


# ---------------------------------------------------------------------------
# StyleGAN2 synthesis (simplified) built on the kernels
# ---------------------------------------------------------------------------
def synthesis(prep, w_latents, *, use_da):
    """Const input + modulated-conv stack + toRGB.  Returns NCHW images."""
    B = w_latents.shape[0]
    const = prep['const']                      # (1, HW0, C0)
    H, W = prep['const_hw']
    x = jnp.broadcast_to(const, (B, const.shape[1], const.shape[2]))

    for l, layer in enumerate(prep['convs']):
        w = layer['w_trg'] if use_da else layer['w_src']
        x = modulated_conv(x, w_latents[:, l], w, layer['mod_w'], layer['mod_b'],
                           layer['bias'], demodulate=True, act=True)
        if layer['upsample']:
            # NN 2x upsample commutes with the 1x1 modulated conv + pointwise lrelu,
            # so it is applied after the conv (4x fewer MACs than upsample-then-conv).
            # TODO(synk): fuse the upsample + next conv into one kernel (upfirdn2d).
            x = upsample2x_nn(x, H, W)
            H, W = 2 * H, 2 * W

    rgb = prep['to_rgb']
    img = modulated_conv(x, w_latents[:, len(prep['convs'])], rgb['w'],
                         rgb['mod_w'], rgb['mod_b'], rgb['bias'],
                         demodulate=False, act=False)          # (B, HW, 3)
    # TODO(synk): per-layer noise injection and skip-branch toRGB accumulation omitted.
    return img.transpose(0, 2, 1).reshape(B, 3, H, W)


# ---------------------------------------------------------------------------
# Inferencer.forward
# ---------------------------------------------------------------------------
def inferencer_forward(prep, latents, *, style_latents=None, alpha=0.0,
                       input_is_latent=False):
    z = latents[0]
    if not input_is_latent:
        w = mapping_network(prep, z)                  # source_generator.style(latents)
    else:
        w = z
    n_latent = 18                                     # hardcoded in the module
    w_broad = jnp.repeat(w[:, None, :], n_latent, axis=1)           # (B, 18, D)

    # src_imgs from the frozen source generator
    src_imgs = synthesis(prep, w_broad, use_da=False)

    # optional style mixing of latent rows 7: with the style latents
    if style_latents is not None:
        w_broad = style_mix(w_broad, style_latents, alpha)

    # kwargs['truncation'] = 1  -> no-op
    # da_type != 'original': trg = source_generator(latents, params=model_da())
    trg_imgs = synthesis(prep, w_broad, use_da=True)
    return src_imgs, trg_imgs


# ---------------------------------------------------------------------------
# One-time parameter preparation (hoisted out of the per-call path)
# ---------------------------------------------------------------------------
def prepare_inference(params, da_deltas, style_dim, lr_mul_mapping=0.01):
    D = style_dim
    map_scale = (1.0 / math.sqrt(D)) * lr_mul_mapping
    map_w = jnp.stack([(w * map_scale).T for (w, _) in params['mapping']]
                      ).astype(jnp.bfloat16)                         # (8, D, D)
    map_b = jnp.stack([(b * lr_mul_mapping).reshape(1, D)
                       for (_, b) in params['mapping']]).astype(jnp.float32)

    mod_scale = 1.0 / math.sqrt(D)
    convs = []
    for l, layer in enumerate(params['convs']):
        cout, cin = layer['conv_w'].shape
        w_base = layer['conv_w'].astype(jnp.float32) * (1.0 / math.sqrt(cin))
        convs.append(dict(
            w_src=w_base.T.astype(jnp.bfloat16),                               # (Cin, Cout)
            # Parametrization (model_da) multiplicative offsets folded once.
            w_trg=(w_base * (1.0 + da_deltas[l])).T.astype(jnp.bfloat16),
            mod_w=(layer['mod_w'].astype(jnp.float32) * mod_scale).T.astype(jnp.bfloat16),
            mod_b=layer['mod_b'].reshape(1, cin).astype(jnp.float32),
            bias=layer['bias'].reshape(1, cout).astype(jnp.float32),
            upsample=bool(layer['upsample']),
        ))

    rgb = params['to_rgb']
    cout, cin = rgb['conv_w'].shape
    w_base = rgb['conv_w'].astype(jnp.float32) * (1.0 / math.sqrt(cin))
    to_rgb = dict(
        w=w_base.T.astype(jnp.bfloat16),
        mod_w=(rgb['mod_w'].astype(jnp.float32) * mod_scale).T.astype(jnp.bfloat16),
        mod_b=rgb['mod_b'].reshape(1, cin).astype(jnp.float32),
        bias=rgb['bias'].reshape(1, cout).astype(jnp.float32),
    )

    const = params['const']                            # (1, C0, H0, W0)
    _, C0, H0, W0 = const.shape
    const = const.reshape(1, C0, H0 * W0).transpose(0, 2, 1).astype(jnp.float32)

    return dict(map_w=map_w, map_b=map_b, convs=convs, to_rgb=to_rgb,
                const=const, const_hw=(H0, W0))


# ---------------------------------------------------------------------------
# Deterministic synthetic parameters (stand-in for torch.load(ckpt))
# ---------------------------------------------------------------------------
def init_params(key, img_size, style_dim):
    conv_dims = get_stylegan_conv_dimensions(img_size)
    keys = iter(jax.random.split(key, 64))

    def nrm(shape, s=1.0):
        return s * jax.random.normal(next(keys), shape, jnp.float32)

    # mapping network: 8 EqualLinear layers (weight init: randn / lr_mul, bias zeros)
    mapping = [(nrm((style_dim, style_dim)) / 0.01,
                jnp.zeros((style_dim,), jnp.float32)) for _ in range(8)]

    convs = []
    for l, (cin, cout) in enumerate(conv_dims):
        convs.append(dict(
            conv_w=nrm((cout, cin)),
            bias=jnp.zeros((cout,), jnp.float32),
            mod_w=nrm((cin, style_dim)),
            mod_b=jnp.ones((cin,), jnp.float32),
            upsample=(l % 2 == 1),
        ))
    c_last = conv_dims[-1][1]
    to_rgb = dict(conv_w=nrm((3, c_last)), bias=jnp.zeros((3,), jnp.float32),
                  mod_w=nrm((c_last, style_dim)), mod_b=jnp.ones((c_last,), jnp.float32))
    const = nrm((1, conv_dims[0][0], 4, 4))

    params = dict(mapping=mapping, convs=convs, to_rgb=to_rgb, const=const)

    # model_da (Parametrization over get_stylegan_conv_dimensions): per-conv offsets.
    da_deltas = [0.05 * jax.random.normal(next(keys), (cout, cin), jnp.float32)
                 for (cin, cout) in conv_dims]
    return params, da_deltas


if __name__ == "__main__":
    key = jax.random.PRNGKey(0)
    img_size = 16          # small StyleGAN2 resolution -> 5 conv layers of 512x512
    style_dim = 128        # latent / style dimension (small)
    B = 2

    params, da_deltas = init_params(key, img_size, style_dim)
    prep = prepare_inference(params, da_deltas, style_dim)

    # input latents (z-space), wrapped in a list like the PyTorch call convention
    z = jax.random.normal(jax.random.fold_in(key, 999), (B, style_dim), jnp.float32)

    # style latents for add_style_mixing(): the real module inverts a style image;
    # here a deterministic synthetic latent is mapped and repeated instead.
    # TODO(synk): GAN-inversion (get_style_latent) has no Pallas equivalent.
    z_style = jax.random.normal(jax.random.fold_in(key, 1000), (1, style_dim), jnp.float32)
    w_style = mapping_network(prep, z_style)
    style_latents = jnp.repeat(w_style, 18, axis=0)      # (18, D), like .squeeze(0)

    @jax.jit
    def run(z_in, sty):
        return inferencer_forward(prep, [z_in], style_latents=sty,
                                  alpha=0.5, input_is_latent=False)

    src_imgs, trg_imgs = run(z, style_latents)
    jax.block_until_ready((src_imgs, trg_imgs))
    assert src_imgs.shape == (B, 3, img_size, img_size)
    assert trg_imgs.shape == (B, 3, img_size, img_size)
    assert bool(jnp.all(jnp.isfinite(src_imgs))) and bool(jnp.all(jnp.isfinite(trg_imgs)))
    print("KERNEL_OK")
</pallas_src>

<mosaic_0001>
module attributes {stable_mosaic.version = 11 : i64} {
  func.func @_mapping_kernel(%arg0: i32, %arg1: memref<1x128xf32, #tpu.memory_space<vmem>>, %arg2: memref<8x128x128xbf16, #tpu.memory_space<vmem>>, %arg3: memref<8x1x128xf32, #tpu.memory_space<vmem>>, %arg4: memref<1x128xf32, #tpu.memory_space<vmem>>) attributes {dimension_semantics = [#tpu.dimension_semantics<arbitrary>], iteration_bounds = array<i64: 1>, scalar_prefetch = 0 : i64, scratch_operands = 0 : i64, tpu.core_type = #tpu.core_type<tc>, window_params = [{pipeline_mode = #tpu.pipeline_mode<synchronous>, transform_indices = @transform_0, window_bounds = array<i64: 1, 128>}, {pipeline_mode = #tpu.pipeline_mode<synchronous>, transform_indices = @transform_1, window_bounds = array<i64: 8, 128, 128>}, {pipeline_mode = #tpu.pipeline_mode<synchronous>, transform_indices = @transform_2, window_bounds = array<i64: 8, 1, 128>}, {pipeline_mode = #tpu.pipeline_mode<synchronous>, transform_indices = @transform_3, window_bounds = array<i64: 1, 128>}]} {
    %c0 = arith.constant 0 : index
    %c0_0 = arith.constant 0 : index
    %0 = vector.load %arg1[%c0, %c0_0] : memref<1x128xf32, #tpu.memory_space<vmem>>, vector<1x128xf32>
    %1 = arith.mulf %0, %0 : vector<1x128xf32>
    %cst = arith.constant dense<0.000000e+00> : vector<1xf32>
    %2 = vector.multi_reduction <add>, %1, %cst [1] : vector<1x128xf32> to vector<1xf32>
    %3 = vector.shape_cast %2 : vector<1xf32> to vector<1x1xf32>
    %cst_1 = arith.constant 1.280000e+02 : f32
    %4 = vector.broadcast %cst_1 : f32 to vector<1x1xf32>
    %5 = arith.divf %3, %4 : vector<1x1xf32>
    %cst_2 = arith.constant 9.99999993E-9 : f32
    %6 = vector.broadcast %cst_2 : f32 to vector<1x1xf32>
    %7 = arith.addf %5, %6 : vector<1x1xf32>
    %8 = math.rsqrt %7 : vector<1x1xf32>
    %9 = vector.broadcast %8 : vector<1x1xf32> to vector<1x128xf32>
    %10 = arith.mulf %0, %9 : vector<1x128xf32>
    %c0_i32 = arith.constant 0 : i32
    %11 = arith.truncf %10 : vector<1x128xf32> to vector<1x128xbf16>
    %12 = arith.index_cast %c0_i32 : i32 to index
    %c0_3 = arith.constant 0 : index
    %c0_4 = arith.constant 0 : index
    %13 = vector.load %arg2[%12, %c0_3, %c0_4] : memref<8x128x128xbf16, #tpu.memory_space<vmem>>, vector<1x128x128xbf16>
    %14 = vector.shape_cast %13 : vector<1x128x128xbf16> to vector<128x128xbf16>
    %cst_5 = arith.constant dense<0.000000e+00> : vector<1x128xf32>
    %15 = tpu.matmul %11, %14, %cst_5 {dimension_numbers = #tpu.dot_dimension_numbers<[1], [0], [0], [1], [0, 0, 1, 1], [], []>} : vector<1x128xbf16>, vector<128x128xbf16>, vector<1x128xf32> -> vector<1x128xf32>
    %16 = arith.index_cast %c0_i32 : i32 to index
    %c0_6 = arith.constant 0 : index
    %c0_7 = arith.constant 0 : index
    %17 = vector.load %arg3[%16, %c0_6, %c0_7] : memref<8x1x128xf32, #tpu.memory_space<vmem>>, vector<1x1x128xf32>
    %18 = vector.shape_cast %17 : vector<1x1x128xf32> to vector<1x128xf32>
    %19 = arith.addf %15, %18 : vector<1x128xf32>
    %cst_8 = arith.constant 0.000000e+00 : f32
    %20 = vector.broadcast %cst_8 : f32 to vector<1x128xf32>
    %21 = arith.cmpf oge, %19, %20 : vector<1x128xf32>
    %cst_9 = arith.constant 2.000000e-01 : f32
    %22 = vector.broadcast %cst_9 : f32 to vector<1x128xf32>
    %23 = arith.mulf %22, %19 : vector<1x128xf32>
    %24 = arith.select %21, %19, %23 : vector<1x128xi1>, vector<1x128xf32>
    %cst_10 = arith.constant 1.41421354 : f32
    %25 = vector.broadcast %cst_10 : f32 to vector<1x128xf32>
    %26 = arith.mulf %24, %25 : vector<1x128xf32>
    %c1_i32 = arith.constant 1 : i32
    %27 = arith.truncf %26 : vector<1x128xf32> to vector<1x128xbf16>
    %28 = arith.index_cast %c1_i32 : i32 to index
    %c0_11 = arith.constant 0 : index
    %c0_12 = arith.constant 0 : index
    %29 = vector.load %arg2[%28, %c0_11, %c0_12] : memref<8x128x128xbf16, #tpu.memory_space<vmem>>, vector<1x128x128xbf16>
    %30 = vector.shape_cast %29 : vector<1x128x128xbf16> to vector<128x128xbf16>
    %cst_13 = arith.constant dense<0.000000e+00> : vector<1x128xf32>
    %31 = tpu.matmul %27, %30, %cst_13 {dimension_numbers = #tpu.dot_dimension_numbers<[1], [0], [0], [1], [0, 0, 1, 1], [], []>} : vector<1x128xbf16>, vector<128x128xbf16>, vector<1x128xf32> -> vector<1x128xf32>
    %32 = arith.index_cast %c1_i32 : i32 to index
    %c0_14 = arith.constant 0 : index
    %c0_15 = arith.constant 0 : index
    %33 = vector.load %arg3[%32, %c0_14, %c0_15] : memref<8x1x128xf32, #tpu.memory_space<vmem>>, vector<1x1x128xf32>
    %34 = vector.shape_cast %33 : vector<1x1x128xf32> to vector<1x128xf32>
    %35 = arith.addf %31, %34 : vector<1x128xf32>
    %cst_16 = arith.constant 0.000000e+00 : f32
    %36 = vector.broadcast %cst_16 : f32 to vector<1x128xf32>
    %37 = arith.cmpf oge, %35, %36 : vector<1x128xf32>
    %cst_17 = arith.constant 2.000000e-01 : f32
    %38 = vector.broadcast %cst_17 : f32 to vector<1x128xf32>
    %39 = arith.mulf %38, %35 : vector<1x128xf32>
    %40 = arith.select %37, %35, %39 : vector<1x128xi1>, vector<1x128xf32>
    %cst_18 = arith.constant 1.41421354 : f32
    %41 = vector.broadcast %cst_18 : f32 to vector<1x128xf32>
    %42 = arith.mulf %40, %41 : vector<1x128xf32>
    %c2_i32 = arith.constant 2 : i32
    %43 = arith.truncf %42 : vector<1x128xf32> to vector<1x128xbf16>
    %44 = arith.index_cast %c2_i32 : i32 to index
    %c0_19 = arith.constant 0 : index
    %c0_20 = arith.constant 0 : index
    %45 = vector.load %arg2[%44, %c0_19, %c0_20] : memref<8x128x128xbf16, #tpu.memory_space<vmem>>, vector<1x128x128xbf16>
    %46 = vector.shape_cast %45 : vector<1x128x128xbf16> to vector<128x128xbf16>
    %cst_21 = arith.constant dense<0.000000e+00> : vector<1x128xf32>
    %47 = tpu.matmul %43, %46, %cst_21 {dimension_numbers = #tpu.dot_dimension_numbers<[1], [0], [0], [1], [0, 0, 1, 1], [], []>} : vector<1x128xbf16>, vector<128x128xbf16>, vector<1x128xf32> -> vector<1x128xf32>
    %48 = arith.index_cast %c2_i32 : i32 to index
    %c0_22 = arith.constant 0 : index
    %c0_23 = arith.constant 0 : index
    %49 = vector.load %arg3[%48, %c0_22, %c0_23] : memref<8x1x128xf32, #tpu.memory_space<vmem>>, vector<1x1x128xf32>
    %50 = vector.shape_cast %49 : vector<1x1x128xf32> to vector<1x128xf32>
    %51 = arith.addf %47, %50 : vector<1x128xf32>
    %cst_24 = arith.constant 0.000000e+00 : f32
    %52 = vector.broadcast %cst_24 : f32 to vector<1x128xf32>
    %53 = arith.cmpf oge, %51, %52 : vector<1x128xf32>
    %cst_25 = arith.constant 2.000000e-01 : f32
    %54 = vector.broadcast %cst_25 : f32 to vector<1x128xf32>
    %55 = arith.mulf %54, %51 : vector<1x128xf32>
    %56 = arith.select %53, %51, %55 : vector<1x128xi1>, vector<1x128xf32>
    %cst_26 = arith.constant 1.41421354 : f32
    %57 = vector.broadcast %cst_26 : f32 to vector<1x128xf32>
    %58 = arith.mulf %56, %57 : vector<1x128xf32>
    %c3_i32 = arith.constant 3 : i32
    %59 = arith.truncf %58 : vector<1x128xf32> to vector<1x128xbf16>
    %60 = arith.index_cast %c3_i32 : i32 to index
    %c0_27 = arith.constant 0 : index
    %c0_28 = arith.constant 0 : index
    %61 = vector.load %arg2[%60, %c0_27, %c0_28] : memref<8x128x128xbf16, #tpu.memory_space<vmem>>, vector<1x128x128xbf16>
    %62 = vector.shape_cast %61 : vector<1x128x128xbf16> to vector<128x128xbf16>
    %cst_29 = arith.constant dense<0.000000e+00> : vector<1x128xf32>
    %63 = tpu.matmul %59, %62, %cst_29 {dimension_numbers = #tpu.dot_dimension_numbers<[1], [0], [0], [1], [0, 0, 1, 1], [], []>} : vector<1x128xbf16>, vector<128x128xbf16>, vector<1x128xf32> -> vector<1x128xf32>
    %64 = arith.index_cast %c3_i32 : i32 to index
    %c0_30 = arith.constant 0 : index
    %c0_31 = arith.constant 0 : index
    %65 = vector.load %arg3[%64, %c0_30, %c0_31] : memref<8x1x128xf32, #tpu.memory_space<vmem>>, vector<1x1x128xf32>
    %66 = vector.shape_cast %65 : vector<1x1x128xf32> to vector<1x128xf32>
    %67 = arith.addf %63, %66 : vector<1x128xf32>
    %cst_32 = arith.constant 0.000000e+00 : f32
    %68 = vector.broadcast %cst_32 : f32 to vector<1x128xf32>
    %69 = arith.cmpf oge, %67, %68 : vector<1x128xf32>
    %cst_33 = arith.constant 2.000000e-01 : f32
    %70 = vector.broadcast %cst_33 : f32 to vector<1x128xf32>
    %71 = arith.mulf %70, %67 : vector<1x128xf32>
    %72 = arith.select %69, %67, %71 : vector<1x128xi1>, vector<1x128xf32>
    %cst_34 = arith.constant 1.41421354 : f32
    %73 = vector.broadcast %cst_34 : f32 to vector<1x128xf32>
    %74 = arith.mulf %72, %73 : vector<1x128xf32>
    %c4_i32 = arith.constant 4 : i32
    %75 = arith.truncf %74 : vector<1x128xf32> to vector<1x128xbf16>
    %76 = arith.index_cast %c4_i32 : i32 to index
    %c0_35 = arith.constant 0 : index
    %c0_36 = arith.constant 0 : index
    %77 = vector.load %arg2[%76, %c0_35, %c0_36] : memref<8x128x128xbf16, #tpu.memory_space<vmem>>, vector<1x128x128xbf16>
    %78 = vector.shape_cast %77 : vector<1x128x128xbf16> to vector<128x128xbf16>
    %cst_37 = arith.constant dense<0.000000e+00> : vector<1x128xf32>
    %79 = tpu.matmul %75, %78, %cst_37 {dimension_numbers = #tpu.dot_dimension_numbers<[1], [0], [0], [1], [0, 0, 1, 1], [], []>} : vector<1x128xbf16>, vector<128x128xbf16>, vector<1x128xf32> -> vector<1x128xf32>
    %80 = arith.index_cast %c4_i32 : i32 to index
    %c0_38 = arith.constant 0 : index
    %c0_39 = arith.constant 0 : index
    %81 = vector.load %arg3[%80, %c0_38, %c0_39] : memref<8x1x128xf32, #tpu.memory_space<vmem>>, vector<1x1x128xf32>
    %82 = vector.shape_cast %81 : vector<1x1x128xf32> to vector<1x128xf32>
    %83 = arith.addf %79, %82 : vector<1x128xf32>
    %cst_40 = arith.constant 0.000000e+00 : f32
    %84 = vector.broadcast %cst_40 : f32 to vector<1x128xf32>
    %85 = arith.cmpf oge, %83, %84 : vector<1x128xf32>
    %cst_41 = arith.constant 2.000000e-01 : f32
    %86 = vector.broadcast %cst_41 : f32 to vector<1x128xf32>
    %87 = arith.mulf %86, %83 : vector<1x128xf32>
    %88 = arith.select %85, %83, %87 : vector<1x128xi1>, vector<1x128xf32>
    %cst_42 = arith.constant 1.41421354 : f32
    %89 = vector.broadcast %cst_42 : f32 to vector<1x128xf32>
    %90 = arith.mulf %88, %89 : vector<1x128xf32>
    %c5_i32 = arith.constant 5 : i32
    %91 = arith.truncf %90 : vector<1x128xf32> to vector<1x128xbf16>
    %92 = arith.index_cast %c5_i32 : i32 to index
    %c0_43 = arith.constant 0 : index
    %c0_44 = arith.constant 0 : index
    %93 = vector.load %arg2[%92, %c0_43, %c0_44] : memref<8x128x128xbf16, #tpu.memory_space<vmem>>, vector<1x128x128xbf16>
    %94 = vector.shape_cast %93 : vector<1x128x128xbf16> to vector<128x128xbf16>
    %cst_45 = arith.constant dense<0.000000e+00> : vector<1x128xf32>
    %95 = tpu.matmul %91, %94, %cst_45 {dimension_numbers = #tpu.dot_dimension_numbers<[1], [0], [0], [1], [0, 0, 1, 1], [], []>} : vector<1x128xbf16>, vector<128x128xbf16>, vector<1x128xf32> -> vector<1x128xf32>
    %96 = arith.index_cast %c5_i32 : i32 to index
    %c0_46 = arith.constant 0 : index
    %c0_47 = arith.constant 0 : index
    %97 = vector.load %arg3[%96, %c0_46, %c0_47] : memref<8x1x128xf32, #tpu.memory_space<vmem>>, vector<1x1x128xf32>
    %98 = vector.shape_cast %97 : vector<1x1x128xf32> to vector<1x128xf32>
    %99 = arith.addf %95, %98 : vector<1x128xf32>
    %cst_48 = arith.constant 0.000000e+00 : f32
    %100 = vector.broadcast %cst_48 : f32 to vector<1x128xf32>
    %101 = arith.cmpf oge, %99, %100 : vector<1x128xf32>
    %cst_49 = arith.constant 2.000000e-01 : f32
    %102 = vector.broadcast %cst_49 : f32 to vector<1x128xf32>
    %103 = arith.mulf %102, %99 : vector<1x128xf32>
    %104 = arith.select %101, %99, %103 : vector<1x128xi1>, vector<1x128xf32>
    %cst_50 = arith.constant 1.41421354 : f32
    %105 = vector.broadcast %cst_50 : f32 to vector<1x128xf32>
    %106 = arith.mulf %104, %105 : vector<1x128xf32>
    %c6_i32 = arith.constant 6 : i32
    %107 = arith.truncf %106 : vector<1x128xf32> to vector<1x128xbf16>
    %108 = arith.index_cast %c6_i32 : i32 to index
    %c0_51 = arith.constant 0 : index
    %c0_52 = arith.constant 0 : index
    %109 = vector.load %arg2[%108, %c0_51, %c0_52] : memref<8x128x128xbf16, #tpu.memory_space<vmem>>, vector<1x128x128xbf16>
    %110 = vector.shape_cast %109 : vector<1x128x128xbf16> to vector<128x128xbf16>
    %cst_53 = arith.constant dense<0.000000e+00> : vector<1x128xf32>
    %111 = tpu.matmul %107, %110, %cst_53 {dimension_numbers = #tpu.dot_dimension_numbers<[1], [0], [0], [1], [0, 0, 1, 1], [], []>} : vector<1x128xbf16>, vector<128x128xbf16>, vector<1x128xf32> -> vector<1x128xf32>
    %112 = arith.index_cast %c6_i32 : i32 to index
    %c0_54 = arith.constant 0 : index
    %c0_55 = arith.constant 0 : index
    %113 = vector.load %arg3[%112, %c0_54, %c0_55] : memref<8x1x128xf32, #tpu.memory_space<vmem>>, vector<1x1x128xf32>
    %114 = vector.shape_cast %113 : vector<1x1x128xf32> to vector<1x128xf32>
    %115 = arith.addf %111, %114 : vector<1x128xf32>
    %cst_56 = arith.constant 0.000000e+00 : f32
    %116 = vector.broadcast %cst_56 : f32 to vector<1x128xf32>
    %117 = arith.cmpf oge, %115, %116 : vector<1x128xf32>
    %cst_57 = arith.constant 2.000000e-01 : f32
    %118 = vector.broadcast %cst_57 : f32 to vector<1x128xf32>
    %119 = arith.mulf %118, %115 : vector<1x128xf32>
    %120 = arith.select %117, %115, %119 : vector<1x128xi1>, vector<1x128xf32>
    %cst_58 = arith.constant 1.41421354 : f32
    %121 = vector.broadcast %cst_58 : f32 to vector<1x128xf32>
    %122 = arith.mulf %120, %121 : vector<1x128xf32>
    %c7_i32 = arith.constant 7 : i32
    %123 = arith.truncf %122 : vector<1x128xf32> to vector<1x128xbf16>
    %124 = arith.index_cast %c7_i32 : i32 to index
    %c0_59 = arith.constant 0 : index
    %c0_60 = arith.constant 0 : index
    %125 = vector.load %arg2[%124, %c0_59, %c0_60] : memref<8x128x128xbf16, #tpu.memory_space<vmem>>, vector<1x128x128xbf16>
    %126 = vector.shape_cast %125 : vector<1x128x128xbf16> to vector<128x128xbf16>
    %cst_61 = arith.constant dense<0.000000e+00> : vector<1x128xf32>
    %127 = tpu.matmul %123, %126, %cst_61 {dimension_numbers = #tpu.dot_dimension_numbers<[1], [0], [0], [1], [0, 0, 1, 1], [], []>} : vector<1x128xbf16>, vector<128x128xbf16>, vector<1x128xf32> -> vector<1x128xf32>
    %128 = arith.index_cast %c7_i32 : i32 to index
    %c0_62 = arith.constant 0 : index
    %c0_63 = arith.constant 0 : index
    %129 = vector.load %arg3[%128, %c0_62, %c0_63] : memref<8x1x128xf32, #tpu.memory_space<vmem>>, vector<1x1x128xf32>
    %130 = vector.shape_cast %129 : vector<1x1x128xf32> to vector<1x128xf32>
    %131 = arith.addf %127, %130 : vector<1x128xf32>
    %cst_64 = arith.constant 0.000000e+00 : f32
    %132 = vector.broadcast %cst_64 : f32 to vector<1x128xf32>
    %133 = arith.cmpf oge, %131, %132 : vector<1x128xf32>
    %cst_65 = arith.constant 2.000000e-01 : f32
    %134 = vector.broadcast %cst_65 : f32 to vector<1x128xf32>
    %135 = arith.mulf %134, %131 : vector<1x128xf32>
    %136 = arith.select %133, %131, %135 : vector<1x128xi1>, vector<1x128xf32>
    %cst_66 = arith.constant 1.41421354 : f32
    %137 = vector.broadcast %cst_66 : f32 to vector<1x128xf32>
    %138 = arith.mulf %136, %137 : vector<1x128xf32>
    %c8_i32 = arith.constant 8 : i32
    %c0_67 = arith.constant 0 : index
    %c0_68 = arith.constant 0 : index
    %139 = vector.load %arg4[%c0_67, %c0_68] : memref<1x128xf32, #tpu.memory_space<vmem>>, vector<1x128xf32>
    tpu.vector_store %arg4[%c0_67, %c0_68], %138 {strides = array<i32>} : memref<1x128xf32, #tpu.memory_space<vmem>>, vector<1x128xf32>,
    return
  }
  func.func @transform_0(%arg0: i32) -> (i32, i32) {
    %c0_i32 = arith.constant 0 : i32
    %c0_i32_0 = arith.constant 0 : i32
    %c0_i32_1 = arith.constant 0 : i32
    return %c0_i32, %c0_i32_0 : i32, i32
  }
  func.func @transform_1(%arg0: i32) -> (i32, i32, i32) {
    %c0_i32 = arith.constant 0 : i32
    %c0_i32_0 = arith.constant 0 : i32
    %c0_i32_1 = arith.constant 0 : i32
    %c0_i32_2 = arith.constant 0 : i32
    return %c0_i32, %c0_i32_0, %c0_i32_1 : i32, i32, i32
  }
  func.func @transform_2(%arg0: i32) -> (i32, i32, i32) {
    %c0_i32 = arith.constant 0 : i32
    %c0_i32_0 = arith.constant 0 : i32
    %c0_i32_1 = arith.constant 0 : i32
    %c0_i32_2 = arith.constant 0 : i32
    return %c0_i32, %c0_i32_0, %c0_i32_1 : i32, i32, i32
  }
  func.func @transform_3(%arg0: i32) -> (i32, i32) {
    %c0_i32 = arith.constant 0 : i32
    %c0_i32_0 = arith.constant 0 : i32
    %c0_i32_1 = arith.constant 0 : i32
    return %c0_i32, %c0_i32_0 : i32, i32
  }
}

</mosaic_0001>

<llo_original>
// kernel: tpu_custom_call.1
$region0: #{tpu_custom_call.1}
  #allocation0 [shape = 'u32[]', space=smem, size = 0x4, offset = 0x4, fixed_abs, tag = 'smem constant byte address 0x4 - core index']
  #allocation1 [shape = 'u32[72,128]{1,0:T(1,128)}', space=vmem, size = 0x9000, scoped, tag = 'internal scratch']
  %s0 = inlined_call_operand.hbm [shape: f32[1,128], index: 0, kind: input, shape index: {}]
  %s1 = inlined_call_operand.hbm [shape: bf16[8,128,128], index: 1, kind: input, shape index: {}]
  %s2 = inlined_call_operand.hbm [shape: f32[8,1,128], index: 2, kind: input, shape index: {}]
  %s3 = inlined_call_operand.hbm [shape: f32[1,128], index: 3, kind: output, shape index: {}]
  %s4 = sld [smem:[#allocation0]]
  $region34: #{tpu_custom_call.1} parent=0
    _
  %s6 = ssub.s32 1, %s4
  %s7 = scalar_select 0, %s6, %s4
  $region1: #{tpu_custom_call.1} parent=0
    #allocation2 [shape = 'u8[512]{0}', space=vmem, size = 0x400, scoped, tag = 'input window, operand 0, single buffered']
    #allocation3 [shape = 's32[1]{0}', space=sflag, size = 0x4, scoped, tag = 'scoped memory for tpu_custom_call.1']
    #allocation4 [shape = 's32[1]{0}', space=sflag, size = 0x4, scoped, tag = 'scoped memory for tpu_custom_call.1']
    #allocation5 [shape = 'u8[262144]{0}', space=vmem, size = 0x40000, scoped, tag = 'input window, operand 1, single buffered']
    #allocation6 [shape = 's32[1]{0}', space=sflag, size = 0x4, scoped, tag = 'scoped memory for tpu_custom_call.1']
    #allocation7 [shape = 'u8[4096]{0}', space=vmem, size = 0x1000, scoped, tag = 'input window, operand 2, single buffered']
    #allocation8 [shape = 'u8[512]{0}', space=vmem, size = 0x400, scoped, tag = 'output window, operand 0, single buffered']
    %8 = vsyncpa [#allocation3], 0
    %9 = vsyncpa [#allocation6], 0
    %10 = vsyncpa [#allocation4], 0
    // Predicated region
    $region2: #{tpu_custom_call.1} parent=1 // pred_check
      _
    $region3: #{tpu_custom_call.1} parent=1 // pred_check_branch
      %12 = sbr.rel (0) target = $region5
    $region4: #{tpu_custom_call.1} parent=1 // pred_region
      %14 = vsyncadd [#allocation3], 0
      %s16 = sshll.u32 %s0, 4
      %s17 = int_to_ptr.hbm [resolvable:$true] %s16
      %s18 = sshll.u32 [#allocation2], 4
      %s19 = int_to_ptr.vmem [resolvable:$true] %s18
      %21 = dma.hbm_to_vmem [thread:$0]  %s17, 16, %s19, [#allocation3]
    $region5: #{tpu_custom_call.1} parent=1 // pred_fallthru
      _
    // Predicated region
    $region6: #{tpu_custom_call.1} parent=1 // pred_check
      _
    $region7: #{tpu_custom_call.1} parent=1 // pred_check_branch
      %23 = sbr.rel (0) target = $region9
    $region8: #{tpu_custom_call.1} parent=1 // pred_region
      %25 = vsyncadd [#allocation6], 0
      %s26 = sshll.u32 %s1, 4
      %s27 = int_to_ptr.hbm [resolvable:$true] %s26
      %s28 = sshll.u32 [#allocation5], 4
      %s29 = int_to_ptr.vmem [resolvable:$true] %s28
      %34 = dma.hbm_to_vmem [thread:$0]  %s27, 8192, %s29, [#allocation6], 64, 64, 4
    $region9: #{tpu_custom_call.1} parent=1 // pred_fallthru
      _
    // Predicated region
    $region10: #{tpu_custom_call.1} parent=1 // pred_check
      _
    $region11: #{tpu_custom_call.1} parent=1 // pred_check_branch
      %36 = sbr.rel (0) target = $region13
    $region12: #{tpu_custom_call.1} parent=1 // pred_region
      %38 = vsyncadd [#allocation6], 0
      %s39 = sshll.u32 %s2, 4
      %s40 = int_to_ptr.hbm [resolvable:$true] %s39
      %s41 = sshll.u32 [#allocation7], 4
      %s42 = int_to_ptr.vmem [resolvable:$true] %s41
      %47 = dma.hbm_to_vmem [thread:$0]  %s40, 128, %s42, [#allocation6], 16, 16, 1
    $region13: #{tpu_custom_call.1} parent=1 // pred_fallthru
      _
    // Predicated region
    $region14: #{tpu_custom_call.1} parent=1 // pred_check
      _
    $region15: #{tpu_custom_call.1} parent=1 // pred_check_branch
      %49 = sbr.rel (0) target = $region17
    $region16: #{tpu_custom_call.1} parent=1 // pred_region
      %51 = dma.done [#allocation3], 16
    $region17: #{tpu_custom_call.1} parent=1 // pred_fallthru
      _
    // Predicated region
    $region18: #{tpu_custom_call.1} parent=1 // pred_check
      _
    $region19: #{tpu_custom_call.1} parent=1 // pred_check_branch
      %53 = sbr.rel (0) target = $region21
    $region20: #{tpu_custom_call.1} parent=1 // pred_region
      %55 = dma.done [#allocation6], 8192
    $region21: #{tpu_custom_call.1} parent=1 // pred_fallthru
      _
    // Predicated region
    $region22: #{tpu_custom_call.1} parent=1 // pred_check
      _
    $region23: #{tpu_custom_call.1} parent=1 // pred_check_branch
      %57 = sbr.rel (0) target = $region25
    $region24: #{tpu_custom_call.1} parent=1 // pred_region
      %59 = dma.done [#allocation6], 128
    $region25: #{tpu_custom_call.1} parent=1 // pred_fallthru
      _
    %v60 = vld [vmem:[#allocation2] sm:$0x1]
    %v61 = vmul.f32 %v60, %v60
    %vm62 = vcmask 1040384
    %v63 = vsel %vm62, %v61, 0.0
    %64 = vadd.xlane.f32.xlu0 %v63
    %v65 = vpop.xlane.xlu0 %64
    %v66 = vrcp.pop 128.0
    %v67 = vmul.f32 128.0, %v66
    %v68 = vsub.f32 1.0, %v67
    %v69 = vmul.f32 %v66, %v68
    %v70 = vadd.f32 %v66, %v69
    %vm71 = vweird.f32 %v66
    %v72 = vsel %vm71, %v66, %v70
    %v73 = vmul.f32 %v65, %v72
    %v74 = vadd.f32 %v73, 1e-08
    %v75 = vrsqrt.pop %v74
    %v76 = vmul.f32 %v75, %v74
    %v77 = vmul.f32 %v76, %v75
    %v78 = vmul.f32 0.5, %v77
    %v79 = vsub.f32 1.5, %v78
    %v80 = vmul.f32 %v75, %v79
    %vm81 = vweird.f32 %v74
    %vm82 = vweird.f32 %v75
    %vm83 = vmor %vm81, %vm82
    %v84 = vsel %vm83, %v75, %v80
    %v85 = vmul.f32 %v60, %v84
    %v86 = vpack.c.bf16 %v85, %v85
    %v87 = vld [vmem:[#allocation5] sm:$0xf]
    %v88 = vld [vmem:[#allocation5 + $0x4] sm:$0xf]
    %v89 = vld [vmem:[#allocation5 + $0x8] sm:$0xf]
    %v90 = vld [vmem:[#allocation5 + $0xc] sm:$0xf]
    %v91 = vld [vmem:[#allocation5 + $0x10] sm:$0xf]
    %v92 = vld [vmem:[#allocation5 + $0x14] sm:$0xf]
    %v93 = vld [vmem:[#allocation5 + $0x18] sm:$0xf]
    %v94 = vld [vmem:[#allocation5 + $0x1c] sm:$0xf]
    %v95 = vld [vmem:[#allocation5 + $0x20] sm:$0xf]
    %v96 = vld [vmem:[#allocation5 + $0x24] sm:$0xf]
    %v97 = vld [vmem:[#allocation5 + $0x28] sm:$0xf]
    %v98 = vld [vmem:[#allocation5 + $0x2c] sm:$0xf]
    %v99 = vld [vmem:[#allocation5 + $0x30] sm:$0xf]
    %v100 = vld [vmem:[#allocation5 + $0x34] sm:$0xf]
    %v101 = vld [vmem:[#allocation5 + $0x38] sm:$0xf]
    %v102 = vld [vmem:[#allocation5 + $0x3c] sm:$0xf]
    %v103 = vld [vmem:[#allocation7] sm:$0x1]
    %v120 = vunpack.c.l.b16 %v87
    %v121 = vunpack.c.l.b16 %v88
    %v122 = vunpack.c.l.b16 %v89
    %v123 = vunpack.c.l.b16 %v90
    %v124 = vunpack.c.l.b16 %v91
    %v125 = vunpack.c.l.b16 %v92
    %v126 = vunpack.c.l.b16 %v93
    %v127 = vunpack.c.l.b16 %v94
    %v128 = vunpack.c.l.b16 %v95
    %v129 = vunpack.c.l.b16 %v96
    %v130 = vunpack.c.l.b16 %v97
    %v131 = vunpack.c.l.b16 %v98
    %v132 = vunpack.c.l.b16 %v99
    %v133 = vunpack.c.l.b16 %v100
    %v134 = vunpack.c.l.b16 %v101
    %v135 = vunpack.c.l.b16 %v102
    %v136 = vpack.c.b16 %v121, %v120
    %v137 = vpack.c.b16 %v123, %v122
    %v138 = vpack.c.b16 %v125, %v124
    %v139 = vpack.c.b16 %v127, %v126
    %v140 = vpack.c.b16 %v129, %v128
    %v141 = vpack.c.b16 %v131, %v130
    %v142 = vpack.c.b16 %v133, %v132
    %v143 = vpack.c.b16 %v135, %v134
    %152 = vmatpush.bf16.msra.mxu0 %v143
    %153 = vmatpush.bf16.msra.mxu0 %v142
    %154 = vmatpush.bf16.msra.mxu0 %v141
    %155 = vmatpush.bf16.msra.mxu0 %v140
    %156 = vmatpush.bf16.msra.mxu0 %v139
    %157 = vmatpush.bf16.msra.mxu0 %v138
    %158 = vmatpush.bf16.msra.mxu0 %v137
    %159 = vmatpush.bf16.msra.mxu0 %v136
    %160 = vmatmul.bf16.gmra.mxu0 %v86
    %v161 = vpop.f32.mrf.mxu0
    %v162 = vadd.f32 %v103, %v161
    %v163 = vpop.f32.mrf.mxu0
    %164 = vdwg.mxu0
    %vm165 = vcmp.ge.f32.partialorder %v162, 0.0
    %v166 = vmul.f32 %v162, 0.2
    %v167 = vsel %vm165, %v162, %v166
    %v168 = vmul.f32 %v167, 1.4142135
    %v169 = vpack.c.bf16 %v168, %v168
    %s170 = scalar_lea.vmem [#allocation5], 64
    %v171 = vld [vmem:[%s170] sm:$0xf]
    %v172 = vld [vmem:[%s170 + $0x4] sm:$0xf]
    %v173 = vld [vmem:[%s170 + $0x8] sm:$0xf]
    %v174 = vld [vmem:[%s170 + $0xc] sm:$0xf]
    %v175 = vld [vmem:[%s170 + $0x10] sm:$0xf]
    %v176 = vld [vmem:[%s170 + $0x14] sm:$0xf]
    %v177 = vld [vmem:[%s170 + $0x18] sm:$0xf]
    %v178 = vld [vmem:[%s170 + $0x1c] sm:$0xf]
    %v179 = vld [vmem:[%s170 + $0x20] sm:$0xf]
    %v180 = vld [vmem:[%s170 + $0x24] sm:$0xf]
    %v181 = vld [vmem:[%s170 + $0x28] sm:$0xf]
    %v182 = vld [vmem:[%s170 + $0x2c] sm:$0xf]
    %v183 = vld [vmem:[%s170 + $0x30] sm:$0xf]
    %v184 = vld [vmem:[%s170 + $0x34] sm:$0xf]
    %v185 = vld [vmem:[%s170 + $0x38] sm:$0xf]
    %v186 = vld [vmem:[%s170 + $0x3c] sm:$0xf]
    %s187 = scalar_lea.vmem [#allocation7], 1
    %v188 = vld [vmem:[%s187] sm:$0x1]
    %v205 = vunpack.c.l.b16 %v171
    %v206 = vunpack.c.l.b16 %v172
    %v207 = vunpack.c.l.b16 %v173
    %v208 = vunpack.c.l.b16 %v174
    %v209 = vunpack.c.l.b16 %v175
    %v210 = vunpack.c.l.b16 %v176
    %v211 = vunpack.c.l.b16 %v177
    %v212 = vunpack.c.l.b16 %v178
    %v213 = vunpack.c.l.b16 %v179
    %v214 = vunpack.c.l.b16 %v180
    %v215 = vunpack.c.l.b16 %v181
    %v216 = vunpack.c.l.b16 %v182
    %v217 = vunpack.c.l.b16 %v183
    %v218 = vunpack.c.l.b16 %v184
    %v219 = vunpack.c.l.b16 %v185
    %v220 = vunpack.c.l.b16 %v186
    %v221 = vpack.c.b16 %v206, %v205
    %v222 = vpack.c.b16 %v208, %v207
    %v223 = vpack.c.b16 %v210, %v209
    %v224 = vpack.c.b16 %v212, %v211
    %v225 = vpack.c.b16 %v214, %v213
    %v226 = vpack.c.b16 %v216, %v215
    %v227 = vpack.c.b16 %v218, %v217
    %v228 = vpack.c.b16 %v220, %v219
    %237 = vmatpush.bf16.msra.mxu0 %v228
    %238 = vmatpush.bf16.msra.mxu0 %v227
    %239 = vmatpush.bf16.msra.mxu0 %v226
    %240 = vmatpush.bf16.msra.mxu0 %v225
    %241 = vmatpush.bf16.msra.mxu0 %v224
    %242 = vmatpush.bf16.msra.mxu0 %v223
    %243 = vmatpush.bf16.msra.mxu0 %v222
    %244 = vmatpush.bf16.msra.mxu0 %v221
    %245 = vmatmul.bf16.gmra.mxu0 %v169
    %v246 = vpop.f32.mrf.mxu0
    %v247 = vadd.f32 %v188, %v246
    %v248 = vpop.f32.mrf.mxu0
    %249 = vdwg.mxu0
    %vm250 = vcmp.ge.f32.partialorder %v247, 0.0
    %v251 = vmul.f32 %v247, 0.2
    %v252 = vsel %vm250, %v247, %v251
    %v253 = vmul.f32 %v252, 1.4142135
    %v254 = vpack.c.bf16 %v253, %v253
    %s255 = scalar_lea.vmem [#allocation5], 128
    %v256 = vld [vmem:[%s255] sm:$0xf]
    %v257 = vld [vmem:[%s255 + $0x4] sm:$0xf]
    %v258 = vld [vmem:[%s255 + $0x8] sm:$0xf]
    %v259 = vld [vmem:[%s255 + $0xc] sm:$0xf]
    %v260 = vld [vmem:[%s255 + $0x10] sm:$0xf]
    %v261 = vld [vmem:[%s255 + $0x14] sm:$0xf]
    %v262 = vld [vmem:[%s255 + $0x18] sm:$0xf]
    %v263 = vld [vmem:[%s255 + $0x1c] sm:$0xf]
    %v264 = vld [vmem:[%s255 + $0x20] sm:$0xf]
    %v265 = vld [vmem:[%s255 + $0x24] sm:$0xf]
    %v266 = vld [vmem:[%s255 + $0x28] sm:$0xf]
    %v267 = vld [vmem:[%s255 + $0x2c] sm:$0xf]
    %v268 = vld [vmem:[%s255 + $0x30] sm:$0xf]
    %v269 = vld [vmem:[%s255 + $0x34] sm:$0xf]
    %v270 = vld [vmem:[%s255 + $0x38] sm:$0xf]
    %v271 = vld [vmem:[%s255 + $0x3c] sm:$0xf]
    %s272 = scalar_lea.vmem [#allocation7], 2
    %v273 = vld [vmem:[%s272] sm:$0x1]
    %v290 = vunpack.c.l.b16 %v256
    %v291 = vunpack.c.l.b16 %v257
    %v292 = vunpack.c.l.b16 %v258
    %v293 = vunpack.c.l.b16 %v259
    %v294 = vunpack.c.l.b16 %v260
    %v295 = vunpack.c.l.b16 %v261
    %v296 = vunpack.c.l.b16 %v262
    %v297 = vunpack.c.l.b16 %v263
    %v298 = vunpack.c.l.b16 %v264
    %v299 = vunpack.c.l.b16 %v265
    %v300 = vunpack.c.l.b16 %v266
    %v301 = vunpack.c.l.b16 %v267
    %v302 = vunpack.c.l.b16 %v268
    %v303 = vunpack.c.l.b16 %v269
    %v304 = vunpack.c.l.b16 %v270
    %v305 = vunpack.c.l.b16 %v271
    %v306 = vpack.c.b16 %v291, %v290
    %v307 = vpack.c.b16 %v293, %v292
    %v308 = vpack.c.b16 %v295, %v294
    %v309 = vpack.c.b16 %v297, %v296
    %v310 = vpack.c.b16 %v299, %v298
    %v311 = vpack.c.b16 %v301, %v300
    %v312 = vpack.c.b16 %v303, %v302
    %v313 = vpack.c.b16 %v305, %v304
    %322 = vmatpush.bf16.msra.mxu0 %v313
    %323 = vmatpush.bf16.msra.mxu0 %v312
    %324 = vmatpush.bf16.msra.mxu0 %v311
    %325 = vmatpush.bf16.msra.mxu0 %v310
    %326 = vmatpush.bf16.msra.mxu0 %v309
    %327 = vmatpush.bf16.msra.mxu0 %v308
    %328 = vmatpush.bf16.msra.mxu0 %v307
    %329 = vmatpush.bf16.msra.mxu0 %v306
    %330 = vmatmul.bf16.gmra.mxu0 %v254
    %v331 = vpop.f32.mrf.mxu0
    %v332 = vadd.f32 %v273, %v331
    %v333 = vpop.f32.mrf.mxu0
    %334 = vdwg.mxu0
    %vm335 = vcmp.ge.f32.partialorder %v332, 0.0
    %v336 = vmul.f32 %v332, 0.2
    %v337 = vsel %vm335, %v332, %v336
    %v338 = vmul.f32 %v337, 1.4142135
    %v339 = vpack.c.bf16 %v338, %v338
    %s340 = scalar_lea.vmem [#allocation5], 192
    %v341 = vld [vmem:[%s340] sm:$0xf]
    %v342 = vld [vmem:[%s340 + $0x4] sm:$0xf]
    %v343 = vld [vmem:[%s340 + $0x8] sm:$0xf]
    %v344 = vld [vmem:[%s340 + $0xc] sm:$0xf]
    %v345 = vld [vmem:[%s340 + $0x10] sm:$0xf]
    %v346 = vld [vmem:[%s340 + $0x14] sm:$0xf]
    %v347 = vld [vmem:[%s340 + $0x18] sm:$0xf]
    %v348 = vld [vmem:[%s340 + $0x1c] sm:$0xf]
    %v349 = vld [vmem:[%s340 + $0x20] sm:$0xf]
    %v350 = vld [vmem:[%s340 + $0x24] sm:$0xf]
    %v351 = vld [vmem:[%s340 + $0x28] sm:$0xf]
    %v352 = vld [vmem:[%s340 + $0x2c] sm:$0xf]
    %v353 = vld [vmem:[%s340 + $0x30] sm:$0xf]
    %v354 = vld [vmem:[%s340 + $0x34] sm:$0xf]
    %v355 = vld [vmem:[%s340 + $0x38] sm:$0xf]
    %v356 = vld [vmem:[%s340 + $0x3c] sm:$0xf]
    %s357 = scalar_lea.vmem [#allocation7], 3
    %v358 = vld [vmem:[%s357] sm:$0x1]
    %v375 = vunpack.c.l.b16 %v341
    %v376 = vunpack.c.l.b16 %v342
    %v377 = vunpack.c.l.b16 %v343
    %v378 = vunpack.c.l.b16 %v344
    %v379 = vunpack.c.l.b16 %v345
    %v380 = vunpack.c.l.b16 %v346
    %v381 = vunpack.c.l.b16 %v347
    %v382 = vunpack.c.l.b16 %v348
    %v383 = vunpack.c.l.b16 %v349
    %v384 = vunpack.c.l.b16 %v350
    %v385 = vunpack.c.l.b16 %v351
    %v386 = vunpack.c.l.b16 %v352
    %v387 = vunpack.c.l.b16 %v353
    %v388 = vunpack.c.l.b16 %v354
    %v389 = vunpack.c.l.b16 %v355
    %v390 = vunpack.c.l.b16 %v356
    %v391 = vpack.c.b16 %v376, %v375
    %v392 = vpack.c.b16 %v378, %v377
    %v393 = vpack.c.b16 %v380, %v379
    %v394 = vpack.c.b16 %v382, %v381
    %v395 = vpack.c.b16 %v384, %v383
    %v396 = vpack.c.b16 %v386, %v385
    %v397 = vpack.c.b16 %v388, %v387
    %v398 = vpack.c.b16 %v390, %v389
    %407 = vmatpush.bf16.msra.mxu0 %v398
    %408 = vmatpush.bf16.msra.mxu0 %v397
    %409 = vmatpush.bf16.msra.mxu0 %v396
    %410 = vmatpush.bf16.msra.mxu0 %v395
    %411 = vmatpush.bf16.msra.mxu0 %v394
    %412 = vmatpush.bf16.msra.mxu0 %v393
    %413 = vmatpush.bf16.msra.mxu0 %v392
    %414 = vmatpush.bf16.msra.mxu0 %v391
    %415 = vmatmul.bf16.gmra.mxu0 %v339
    %v416 = vpop.f32.mrf.mxu0
    %v417 = vadd.f32 %v358, %v416
    %v418 = vpop.f32.mrf.mxu0
    %419 = vdwg.mxu0
    %vm420 = vcmp.ge.f32.partialorder %v417, 0.0
    %v421 = vmul.f32 %v417, 0.2
    %v422 = vsel %vm420, %v417, %v421
    %v423 = vmul.f32 %v422, 1.4142135
    %v424 = vpack.c.bf16 %v423, %v423
    %s425 = scalar_lea.vmem [#allocation5], 256
    %v426 = vld [vmem:[%s425] sm:$0xf]
    %v427 = vld [vmem:[%s425 + $0x4] sm:$0xf]
    %v428 = vld [vmem:[%s425 + $0x8] sm:$0xf]
    %v429 = vld [vmem:[%s425 + $0xc] sm:$0xf]
    %v430 = vld [vmem:[%s425 + $0x10] sm:$0xf]
    %v431 = vld [vmem:[%s425 + $0x14] sm:$0xf]
    %v432 = vld [vmem:[%s425 + $0x18] sm:$0xf]
    %v433 = vld [vmem:[%s425 + $0x1c] sm:$0xf]
    %v434 = vld [vmem:[%s425 + $0x20] sm:$0xf]
    %v435 = vld [vmem:[%s425 + $0x24] sm:$0xf]
    %v436 = vld [vmem:[%s425 + $0x28] sm:$0xf]
    %v437 = vld [vmem:[%s425 + $0x2c] sm:$0xf]
    %v438 = vld [vmem:[%s425 + $0x30] sm:$0xf]
    %v439 = vld [vmem:[%s425 + $0x34] sm:$0xf]
    %v440 = vld [vmem:[%s425 + $0x38] sm:$0xf]
    %v441 = vld [vmem:[%s425 + $0x3c] sm:$0xf]
    %s442 = scalar_lea.vmem [#allocation7], 4
    %v443 = vld [vmem:[%s442] sm:$0x1]
    %v460 = vunpack.c.l.b16 %v426
    %v461 = vunpack.c.l.b16 %v427
    %v462 = vunpack.c.l.b16 %v428
    %v463 = vunpack.c.l.b16 %v429
    %v464 = vunpack.c.l.b16 %v430
    %v465 = vunpack.c.l.b16 %v431
    %v466 = vunpack.c.l.b16 %v432
    %v467 = vunpack.c.l.b16 %v433
    %v468 = vunpack.c.l.b16 %v434
    %v469 = vunpack.c.l.b16 %v435
    %v470 = vunpack.c.l.b16 %v436
    %v471 = vunpack.c.l.b16 %v437
    %v472 = vunpack.c.l.b16 %v438
    %v473 = vunpack.c.l.b16 %v439
    %v474 = vunpack.c.l.b16 %v440
    %v475 = vunpack.c.l.b16 %v441
    %v476 = vpack.c.b16 %v461, %v460
    %v477 = vpack.c.b16 %v463, %v462
    %v478 = vpack.c.b16 %v465, %v464
    %v479 = vpack.c.b16 %v467, %v466
    %v480 = vpack.c.b16 %v469, %v468
    %v481 = vpack.c.b16 %v471, %v470
    %v482 = vpack.c.b16 %v473, %v472
    %v483 = vpack.c.b16 %v475, %v474
    %492 = vmatpush.bf16.msra.mxu0 %v483
    %493 = vmatpush.bf16.msra.mxu0 %v482
    %494 = vmatpush.bf16.msra.mxu0 %v481
    %495 = vmatpush.bf16.msra.mxu0 %v480
    %496 = vmatpush.bf16.msra.mxu0 %v479
    %497 = vmatpush.bf16.msra.mxu0 %v478
    %498 = vmatpush.bf16.msra.mxu0 %v477
    %499 = vmatpush.bf16.msra.mxu0 %v476
    %500 = vmatmul.bf16.gmra.mxu0 %v424
    %v501 = vpop.f32.mrf.mxu0
    %v502 = vadd.f32 %v443, %v501
    %v503 = vpop.f32.mrf.mxu0
    %504 = vdwg.mxu0
    %vm505 = vcmp.ge.f32.partialorder %v502, 0.0
    %v506 = vmul.f32 %v502, 0.2
    %v507 = vsel %vm505, %v502, %v506
    %v508 = vmul.f32 %v507, 1.4142135
    %v509 = vpack.c.bf16 %v508, %v508
    %s510 = scalar_lea.vmem [#allocation5], 320
    %v511 = vld [vmem:[%s510] sm:$0xf]
    %v512 = vld [vmem:[%s510 + $0x4] sm:$0xf]
    %v513 = vld [vmem:[%s510 + $0x8] sm:$0xf]
    %v514 = vld [vmem:[%s510 + $0xc] sm:$0xf]
    %v515 = vld [vmem:[%s510 + $0x10] sm:$0xf]
    %v516 = vld [vmem:[%s510 + $0x14] sm:$0xf]
    %v517 = vld [vmem:[%s510 + $0x18] sm:$0xf]
    %v518 = vld [vmem:[%s510 + $0x1c] sm:$0xf]
    %v519 = vld [vmem:[%s510 + $0x20] sm:$0xf]
    %v520 = vld [vmem:[%s510 + $0x24] sm:$0xf]
    %v521 = vld [vmem:[%s510 + $0x28] sm:$0xf]
    %v522 = vld [vmem:[%s510 + $0x2c] sm:$0xf]
    %v523 = vld [vmem:[%s510 + $0x30] sm:$0xf]
    %v524 = vld [vmem:[%s510 + $0x34] sm:$0xf]
    %v525 = vld [vmem:[%s510 + $0x38] sm:$0xf]
    %v526 = vld [vmem:[%s510 + $0x3c] sm:$0xf]
    %s527 = scalar_lea.vmem [#allocation7], 5
    %v528 = vld [vmem:[%s527] sm:$0x1]
    %v545 = vunpack.c.l.b16 %v511
    %v546 = vunpack.c.l.b16 %v512
    %v547 = vunpack.c.l.b16 %v513
    %v548 = vunpack.c.l.b16 %v514
    %v549 = vunpack.c.l.b16 %v515
    %v550 = vunpack.c.l.b16 %v516
    %v551 = vunpack.c.l.b16 %v517
    %v552 = vunpack.c.l.b16 %v518
    %v553 = vunpack.c.l.b16 %v519
    %v554 = vunpack.c.l.b16 %v520
    %v555 = vunpack.c.l.b16 %v521
    %v556 = vunpack.c.l.b16 %v522
    %v557 = vunpack.c.l.b16 %v523
    %v558 = vunpack.c.l.b16 %v524
    %v559 = vunpack.c.l.b16 %v525
    %v560 = vunpack.c.l.b16 %v526
    %v561 = vpack.c.b16 %v546, %v545
    %v562 = vpack.c.b16 %v548, %v547
    %v563 = vpack.c.b16 %v550, %v549
    %v564 = vpack.c.b16 %v552, %v551
    %v565 = vpack.c.b16 %v554, %v553
    %v566 = vpack.c.b16 %v556, %v555
    %v567 = vpack.c.b16 %v558, %v557
    %v568 = vpack.c.b16 %v560, %v559
    %577 = vmatpush.bf16.msra.mxu0 %v568
    %578 = vmatpush.bf16.msra.mxu0 %v567
    %579 = vmatpush.bf16.msra.mxu0 %v566
    %580 = vmatpush.bf16.msra.mxu0 %v565
    %581 = vmatpush.bf16.msra.mxu0 %v564
    %582 = vmatpush.bf16.msra.mxu0 %v563
    %583 = vmatpush.bf16.msra.mxu0 %v562
    %584 = vmatpush.bf16.msra.mxu0 %v561
    %585 = vmatmul.bf16.gmra.mxu0 %v509
    %v586 = vpop.f32.mrf.mxu0
    %v587 = vadd.f32 %v528, %v586
    %v588 = vpop.f32.mrf.mxu0
    %589 = vdwg.mxu0
    %vm590 = vcmp.ge.f32.partialorder %v587, 0.0
    %v591 = vmul.f32 %v587, 0.2
    %v592 = vsel %vm590, %v587, %v591
    %v593 = vmul.f32 %v592, 1.4142135
    %v594 = vpack.c.bf16 %v593, %v593
    %s595 = scalar_lea.vmem [#allocation5], 384
    %v596 = vld [vmem:[%s595] sm:$0xf]
    %v597 = vld [vmem:[%s595 + $0x4] sm:$0xf]
    %v598 = vld [vmem:[%s595 + $0x8] sm:$0xf]
    %v599 = vld [vmem:[%s595 + $0xc] sm:$0xf]
    %v600 = vld [vmem:[%s595 + $0x10] sm:$0xf]
    %v601 = vld [vmem:[%s595 + $0x14] sm:$0xf]
    %v602 = vld [vmem:[%s595 + $0x18] sm:$0xf]
    %v603 = vld [vmem:[%s595 + $0x1c] sm:$0xf]
    %v604 = vld [vmem:[%s595 + $0x20] sm:$0xf]
    %v605 = vld [vmem:[%s595 + $0x24] sm:$0xf]
    %v606 = vld [vmem:[%s595 + $0x28] sm:$0xf]
    %v607 = vld [vmem:[%s595 + $0x2c] sm:$0xf]
    %v608 = vld [vmem:[%s595 + $0x30] sm:$0xf]
    %v609 = vld [vmem:[%s595 + $0x34] sm:$0xf]
    %v610 = vld [vmem:[%s595 + $0x38] sm:$0xf]
    %v611 = vld [vmem:[%s595 + $0x3c] sm:$0xf]
    %s612 = scalar_lea.vmem [#allocation7], 6
    %v613 = vld [vmem:[%s612] sm:$0x1]
    %v630 = vunpack.c.l.b16 %v596
    %v631 = vunpack.c.l.b16 %v597
    %v632 = vunpack.c.l.b16 %v598
    %v633 = vunpack.c.l.b16 %v599
    %v634 = vunpack.c.l.b16 %v600
    %v635 = vunpack.c.l.b16 %v601
    %v636 = vunpack.c.l.b16 %v602
    %v637 = vunpack.c.l.b16 %v603
    %v638 = vunpack.c.l.b16 %v604
    %v639 = vunpack.c.l.b16 %v605
    %v640 = vunpack.c.l.b16 %v606
    %v641 = vunpack.c.l.b16 %v607
    %v642 = vunpack.c.l.b16 %v608
    %v643 = vunpack.c.l.b16 %v609
    %v644 = vunpack.c.l.b16 %v610
    %v645 = vunpack.c.l.b16 %v611
    %v646 = vpack.c.b16 %v631, %v630
    %v647 = vpack.c.b16 %v633, %v632
    %v648 = vpack.c.b16 %v635, %v634
    %v649 = vpack.c.b16 %v637, %v636
    %v650 = vpack.c.b16 %v639, %v638
    %v651 = vpack.c.b16 %v641, %v640
    %v652 = vpack.c.b16 %v643, %v642
    %v653 = vpack.c.b16 %v645, %v644
    %662 = vmatpush.bf16.msra.mxu0 %v653
    %663 = vmatpush.bf16.msra.mxu0 %v652
    %664 = vmatpush.bf16.msra.mxu0 %v651
    %665 = vmatpush.bf16.msra.mxu0 %v650
    %666 = vmatpush.bf16.msra.mxu0 %v649
    %667 = vmatpush.bf16.msra.mxu0 %v648
    %668 = vmatpush.bf16.msra.mxu0 %v647
    %669 = vmatpush.bf16.msra.mxu0 %v646
    %670 = vmatmul.bf16.gmra.mxu0 %v594
    %v671 = vpop.f32.mrf.mxu0
    %v672 = vadd.f32 %v613, %v671
    %v673 = vpop.f32.mrf.mxu0
    %674 = vdwg.mxu0
    %vm675 = vcmp.ge.f32.partialorder %v672, 0.0
    %v676 = vmul.f32 %v672, 0.2
    %v677 = vsel %vm675, %v672, %v676
    %v678 = vmul.f32 %v677, 1.4142135
    %v679 = vpack.c.bf16 %v678, %v678
    %s680 = scalar_lea.vmem [#allocation5], 448
    %v681 = vld [vmem:[%s680] sm:$0xf]
    %v682 = vld [vmem:[%s680 + $0x4] sm:$0xf]
    %v683 = vld [vmem:[%s680 + $0x8] sm:$0xf]
    %v684 = vld [vmem:[%s680 + $0xc] sm:$0xf]
    %v685 = vld [vmem:[%s680 + $0x10] sm:$0xf]
    %v686 = vld [vmem:[%s680 + $0x14] sm:$0xf]
    %v687 = vld [vmem:[%s680 + $0x18] sm:$0xf]
    %v688 = vld [vmem:[%s680 + $0x1c] sm:$0xf]
    %v689 = vld [vmem:[%s680 + $0x20] sm:$0xf]
    %v690 = vld [vmem:[%s680 + $0x24] sm:$0xf]
    %v691 = vld [vmem:[%s680 + $0x28] sm:$0xf]
    %v692 = vld [vmem:[%s680 + $0x2c] sm:$0xf]
    %v693 = vld [vmem:[%s680 + $0x30] sm:$0xf]
    %v694 = vld [vmem:[%s680 + $0x34] sm:$0xf]
    %v695 = vld [vmem:[%s680 + $0x38] sm:$0xf]
    %v696 = vld [vmem:[%s680 + $0x3c] sm:$0xf]
    %s697 = scalar_lea.vmem [#allocation7], 7
    %v698 = vld [vmem:[%s697] sm:$0x1]
    %v715 = vunpack.c.l.b16 %v681
    %v716 = vunpack.c.l.b16 %v682
    %v717 = vunpack.c.l.b16 %v683
    %v718 = vunpack.c.l.b16 %v684
    %v719 = vunpack.c.l.b16 %v685
    %v720 = vunpack.c.l.b16 %v686
    %v721 = vunpack.c.l.b16 %v687
    %v722 = vunpack.c.l.b16 %v688
    %v723 = vunpack.c.l.b16 %v689
    %v724 = vunpack.c.l.b16 %v690
    %v725 = vunpack.c.l.b16 %v691
    %v726 = vunpack.c.l.b16 %v692
    %v727 = vunpack.c.l.b16 %v693
    %v728 = vunpack.c.l.b16 %v694
    %v729 = vunpack.c.l.b16 %v695
    %v730 = vunpack.c.l.b16 %v696
    %v731 = vpack.c.b16 %v716, %v715
    %v732 = vpack.c.b16 %v718, %v717
    %v733 = vpack.c.b16 %v720, %v719
    %v734 = vpack.c.b16 %v722, %v721
    %v735 = vpack.c.b16 %v724, %v723
    %v736 = vpack.c.b16 %v726, %v725
    %v737 = vpack.c.b16 %v728, %v727
    %v738 = vpack.c.b16 %v730, %v729
    %747 = vmatpush.bf16.msra.mxu0 %v738
    %748 = vmatpush.bf16.msra.mxu0 %v737
    %749 = vmatpush.bf16.msra.mxu0 %v736
    %750 = vmatpush.bf16.msra.mxu0 %v735
    %751 = vmatpush.bf16.msra.mxu0 %v734
    %752 = vmatpush.bf16.msra.mxu0 %v733
    %753 = vmatpush.bf16.msra.mxu0 %v732
    %754 = vmatpush.bf16.msra.mxu0 %v731
    %755 = vmatmul.bf16.gmra.mxu0 %v679
    %v756 = vpop.f32.mrf.mxu0
    %v757 = vadd.f32 %v698, %v756
    %v758 = vpop.f32.mrf.mxu0
    %759 = vdwg.mxu0
    %vm760 = vcmp.ge.f32.partialorder %v757, 0.0
    %v761 = vmul.f32 %v757, 0.2
    %v762 = vsel %vm760, %v757, %v761
    %v763 = vmul.f32 %v762, 1.4142135
    %764 = vst [vmem:[#allocation8] sm:$0x1] %v763
    // Predicated region
    $region26: #{tpu_custom_call.1} parent=1 // pred_check
      _
    $region27: #{tpu_custom_call.1} parent=1 // pred_check_branch
      %766 = sbr.rel (0) target = $region29
    $region28: #{tpu_custom_call.1} parent=1 // pred_region
      %768 = vsyncadd [#allocation4], 0
      %s770 = sshll.u32 [#allocation8], 4
      %s771 = int_to_ptr.vmem [resolvable:$true] %s770
      %s772 = sshll.u32 %s3, 4
      %s773 = int_to_ptr.hbm [resolvable:$true] %s772
      %775 = dma.vmem_to_hbm [thread:$0]  %s771, 16, %s773, [#allocation4]
    $region29: #{tpu_custom_call.1} parent=1 // pred_fallthru
      _
    // Predicated region
    $region30: #{tpu_custom_call.1} parent=1 // pred_check
      _
    $region31: #{tpu_custom_call.1} parent=1 // pred_check_branch
      %777 = sbr.rel (0) target = $region33
    $region32: #{tpu_custom_call.1} parent=1 // pred_region
      %779 = dma.done [#allocation4], 16
    $region33: #{tpu_custom_call.1} parent=1 // pred_fallthru
      _
    %780 = vsyncpa [#allocation3], 1
    %781 = vsyncpa [#allocation6], 1
    %782 = vsyncpa [#allocation4], 1

</llo_original>
